<compile_context>
chip_gen: v6e
topology: v6e:2x2x1
jax: 0.10.0
libtpu: 0.0.40
codegen_flags: <defaults>
</compile_context>

<pallas_src>
import math
import functools

import jax
import jax.numpy as jnp
from jax import lax
from jax.experimental import pallas as pl
from jax.experimental.pallas import tpu as pltpu


# ----------------------------- config ---------------------------------------
class Config:
    hidden_size = 32
    num_attention_heads = 4
    intermediate_size = 64
    attention_probs_dropout_prob = 0.0   # dropout is identity in this kernel
    hidden_dropout_prob = 0.0
    layer_norm_eps = 1e-12


# ----------------------------- helpers (in-kernel) ---------------------------
def _layer_norm(x, gamma, beta, eps):
    # x: (S, H) f32, gamma/beta: (1, H) f32 — LN statistics stay in f32.
    mean = jnp.mean(x, axis=-1, keepdims=True)
    var = jnp.mean(jnp.square(x - mean), axis=-1, keepdims=True)
    inv = lax.rsqrt(var + eps)
    return (x - mean) * inv * gamma + beta


def _gelu(x):
    # exact (erf-based) GELU, as in original BERT
    return 0.5 * x * (1.0 + lax.erf(x * (1.0 / math.sqrt(2.0))))


# ----------------------------- kernel ----------------------------------------
def _bert_layer_kernel(nh, hd, inter_size, eps,
                       x_ref, mask_ref, wa_ref, w2_ref, vec_ref, out_ref):
    H = nh * hd
    bf16 = jnp.bfloat16

    x = x_ref[...]                                  # (S, H)  f32, one batch elem
    mask = mask_ref[...]                            # (1, 1, S) f32

    # --- packed weights / vectors -------------------------------------------
    wa = wa_ref[...]                                # (H, 3H + H + I) bf16
    w_qkv = wa[:, 0:3 * H]                          # (H, 3H)  (Q part pre-scaled)
    w_o = wa[:, 3 * H:4 * H]                        # (H, H)
    w_i = wa[:, 4 * H:4 * H + inter_size]           # (H, I)

    vec = vec_ref[...]                              # (8, 128) f32
    b_qkv = vec[0:1, 0:3 * H]
    b_i = vec[1:2, 0:inter_size]
    b_o = vec[2:3, 0:H]
    b_2 = vec[3:4, 0:H]
    g1, be1 = vec[4:5, 0:H], vec[5:6, 0:H]
    g2, be2 = vec[6:7, 0:H], vec[7:8, 0:H]

    # --- fused QKV projection: one MXU matmul, bf16 operands, f32 accum ------
    qkv = jnp.dot(x.astype(bf16), w_qkv,
                  preferred_element_type=jnp.float32) + b_qkv        # (S, 3H)

    # --- head split (static lane slices stacked along a leading batch axis) --
    q3 = jnp.stack([qkv[:, h * hd:(h + 1) * hd] for h in range(nh)], axis=0)
    k3 = jnp.stack([qkv[:, H + h * hd:H + (h + 1) * hd] for h in range(nh)], axis=0)
    v3 = jnp.stack([qkv[:, 2 * H + h * hd:2 * H + (h + 1) * hd] for h in range(nh)], axis=0)
    # q3/k3/v3: (nh, S, hd); 1/sqrt(hd) is already folded into the Q weights/bias.

    # --- attention scores + softmax (f32) -------------------------------------
    scores = jnp.einsum('hqd,hkd->hqk', q3.astype(bf16), k3.astype(bf16),
                        preferred_element_type=jnp.float32)          # (nh, S, S)
    # multiplicative key mask, exactly as in the reference module: scores * mask
    scores = scores * mask
    scores = scores - jnp.max(scores, axis=-1, keepdims=True)
    e = jnp.exp(scores)
    probs = e * pl.reciprocal(jnp.sum(e, axis=-1, keepdims=True), approx=True)
    # TODO(synk): attention dropout omitted (eval mode / p == 0).

    ctx = jnp.einsum('hqk,hkd->hqd', probs.astype(bf16), v3.astype(bf16),
                     preferred_element_type=jnp.float32)             # (nh, S, hd)

    # --- head merge + single (S,H)x(H,H) output projection on the MXU --------
    ctx_m = jnp.concatenate([ctx[h] for h in range(nh)], axis=-1)    # (S, H)
    attn = jnp.dot(ctx_m.astype(bf16), w_o,
                   preferred_element_type=jnp.float32) + b_o

    # --- BertSelfOutput: residual + LayerNorm ---------------------------------
    attn = _layer_norm(attn + x, g1, be1, eps)

    # --- BertIntermediate: dense + GELU ---------------------------------------
    inter = jnp.dot(attn.astype(bf16), w_i,
                    preferred_element_type=jnp.float32) + b_i
    inter = _gelu(inter)

    # --- BertOutput: dense + residual + LayerNorm ------------------------------
    out = jnp.dot(inter.astype(bf16), w2_ref[...],
                  preferred_element_type=jnp.float32) + b_2
    out = _layer_norm(out + attn, g2, be2, eps)

    out_ref[...] = out.astype(out_ref.dtype)


# ----------------------------- wrapper ----------------------------------------
def bert_layer_pallas(hidden_states, attention_mask, params, cfg: Config):
    B, S, H = hidden_states.shape
    nh = cfg.num_attention_heads
    hd = H // nh
    I = cfg.intermediate_size
    assert nh * hd == H

    (wq, bq, wk, bk, wv, bv, wo, bo, g1, be1, wi, bi, w2, b2, g2, be2) = params

    scale = 1.0 / math.sqrt(hd)

    # ---- operand packing (trace time) ---------------------------------------
    # Weight slab A: [ wq*scale | wk | wv | wo | wi ]  -> (H, 3H + H + I), bf16.
    w_a = jnp.concatenate([wq * scale, wk, wv, wo, wi], axis=1).astype(jnp.bfloat16)
    w_b = w2.astype(jnp.bfloat16)                                   # (I, H) bf16

    # All bias / LayerNorm vectors in one lane-dense (8, lane_w) f32 slab.
    lane_w = ((max(3 * H, I, 128) + 127) // 128) * 128

    def row(v):
        v = v.reshape(1, -1)
        return jnp.pad(v, ((0, 0), (0, lane_w - v.shape[1])))

    vec = jnp.concatenate([
        row(jnp.concatenate([bq * scale, bk, bv], axis=1)),   # 0: fused QKV bias
        row(bi),                                              # 1: intermediate bias
        row(bo),                                              # 2: attn-out bias
        row(b2),                                              # 3: ffn-out bias
        row(g1), row(be1),                                    # 4,5: LN1 gamma/beta
        row(g2), row(be2),                                    # 6,7: LN2 gamma/beta
    ], axis=0)                                                # (8, lane_w) f32

    x2d = hidden_states.reshape(B * S, H)
    mask3 = attention_mask.reshape(B, 1, S)

    kernel = functools.partial(_bert_layer_kernel, nh, hd, I, cfg.layer_norm_eps)

    # Grid-invariant operands: constant index_map + single buffer (no pointless
    # double-buffering of weights).
    def const_spec(shape):
        return pl.BlockSpec(shape, lambda b, _n=len(shape): (0,) * _n,
                            pipeline_mode=pl.Buffered(1))

    out2d = pl.pallas_call(
        kernel,
        out_shape=jax.ShapeDtypeStruct((B * S, H), jnp.float32),
        grid_spec=pltpu.PrefetchScalarGridSpec(
            num_scalar_prefetch=0,
            grid=(B,),                                   # one batch element per step
            in_specs=[
                pl.BlockSpec((S, H), lambda b: (b, 0)),        # activations tile
                pl.BlockSpec((1, 1, S), lambda b: (b, 0, 0)),  # per-batch mask
                const_spec(w_a.shape),                         # fused weight slab
                const_spec(w_b.shape),                         # FFN output weight
                const_spec(vec.shape),                         # bias / LN vectors
            ],
            out_specs=pl.BlockSpec((S, H), lambda b: (b, 0)),
        ),
        compiler_params=pltpu.CompilerParams(
            dimension_semantics=("parallel",)),          # v7x: split grid over TCs
    )(x2d, mask3, w_a, w_b, vec)

    return out2d.reshape(B, S, H)


# ----------------------------- reference (pure JAX, same math) ----------------
def bert_layer_ref(hidden_states, attention_mask, params, cfg: Config):
    (wq, bq, wk, bk, wv, bv, wo, bo, g1, be1, wi, bi, w2, b2, g2, be2) = params
    B, S, H = hidden_states.shape
    nh = cfg.num_attention_heads
    hd = H // nh

    def ln(x, g, b):
        m = jnp.mean(x, -1, keepdims=True)
        v = jnp.mean(jnp.square(x - m), -1, keepdims=True)
        return (x - m) * lax.rsqrt(v + cfg.layer_norm_eps) * g + b

    q = hidden_states @ wq + bq
    k = hidden_states @ wk + bk
    v = hidden_states @ wv + bv

    def split(t):
        return t.reshape(B, S, nh, hd).transpose(0, 2, 1, 3)

    qh, kh, vh = split(q), split(k), split(v)
    scores = jnp.einsum("bhqd,bhkd->bhqk", qh, kh) / math.sqrt(hd)
    # NOTE: multiplicative mask (scores * mask), exactly as in the PyTorch module.
    scores = scores * attention_mask[:, None, None, :]
    probs = jax.nn.softmax(scores, axis=-1)
    ctx = jnp.einsum("bhqk,bhkd->bhqd", probs, vh)
    ctx = ctx.transpose(0, 2, 1, 3).reshape(B, S, H)
    attn = ln(ctx @ wo + bo + hidden_states, g1, be1)
    pre = attn @ wi + bi
    inter = 0.5 * pre * (1.0 + lax.erf(pre / math.sqrt(2.0)))
    out = ln(inter @ w2 + b2 + attn, g2, be2)
    return out


# ----------------------------- main --------------------------------------------
if __name__ == "__main__":
    cfg = Config()
    B, S, H, I = 2, 8, cfg.hidden_size, cfg.intermediate_size

    key = jax.random.PRNGKey(0)
    keys = jax.random.split(key, 16)

    def dense(kw, kb, fan_in, fan_out):
        w = jax.random.normal(kw, (fan_in, fan_out), jnp.float32) * 0.02
        b = jax.random.normal(kb, (1, fan_out), jnp.float32) * 0.02
        return w, b

    wq, bq = dense(keys[0], keys[1], H, H)
    wk, bk = dense(keys[2], keys[3], H, H)
    wv, bv = dense(keys[4], keys[5], H, H)
    wo, bo = dense(keys[6], keys[7], H, H)
    wi, bi = dense(keys[8], keys[9], H, I)
    w2, b2 = dense(keys[10], keys[11], I, H)
    g1 = jnp.ones((1, H), jnp.float32)
    be1 = jnp.zeros((1, H), jnp.float32)
    g2 = jnp.ones((1, H), jnp.float32)
    be2 = jnp.zeros((1, H), jnp.float32)
    params = (wq, bq, wk, bk, wv, bv, wo, bo, g1, be1, wi, bi, w2, b2, g2, be2)

    hidden_states = jax.random.normal(keys[12], (B, S, H), jnp.float32)
    # multiplicative mask (1 = attend, 0 = score zeroed), as in the reference
    attention_mask = jnp.concatenate(
        [jnp.ones((B, S - 2), jnp.float32), jnp.zeros((B, 2), jnp.float32)],
        axis=-1)

    out = bert_layer_pallas(hidden_states, attention_mask, params, cfg)
    out = jax.block_until_ready(out)

    ref = bert_layer_ref(hidden_states, attention_mask, params, cfg)
    # tolerance covers bf16 operands at the MXU boundaries + the approximate
    # (EUP) softmax reciprocal; softmax/LayerNorm/GELU math stays f32.
    assert jnp.allclose(out, ref, atol=1e-2, rtol=1e-2), "mismatch vs reference"

    print("KERNEL_OK")
</pallas_src>

<mosaic_0001>
module attributes {stable_mosaic.version = 11 : i64} {
  func.func @_bert_layer_kernel(%arg0: i32, %arg1: memref<8x32xf32, #tpu.memory_space<vmem>>, %arg2: memref<1x1x8xf32, #tpu.memory_space<vmem>>, %arg3: memref<32x192xbf16, #tpu.memory_space<vmem>>, %arg4: memref<64x32xbf16, #tpu.memory_space<vmem>>, %arg5: memref<8x128xf32, #tpu.memory_space<vmem>>, %arg6: memref<8x32xf32, #tpu.memory_space<vmem>>) attributes {dimension_semantics = [#tpu.dimension_semantics<parallel>], iteration_bounds = array<i64: 2>, scalar_prefetch = 0 : i64, scratch_operands = 0 : i64, tpu.core_type = #tpu.core_type<tc>, window_params = [{transform_indices = @transform_0, window_bounds = array<i64: 8, 32>}, {transform_indices = @transform_1, window_bounds = array<i64: 1, 1, 8>}, {pipeline_mode = #tpu.pipeline_mode<synchronous>, transform_indices = @transform_2, window_bounds = array<i64: 32, 192>}, {pipeline_mode = #tpu.pipeline_mode<synchronous>, transform_indices = @transform_3, window_bounds = array<i64: 64, 32>}, {pipeline_mode = #tpu.pipeline_mode<synchronous>, transform_indices = @transform_4, window_bounds = array<i64: 8, 128>}, {transform_indices = @transform_5, window_bounds = array<i64: 8, 32>}]} {
    %c0 = arith.constant 0 : index
    %c0_0 = arith.constant 0 : index
    %0 = vector.load %arg1[%c0, %c0_0] : memref<8x32xf32, #tpu.memory_space<vmem>>, vector<8x32xf32>
    %c0_1 = arith.constant 0 : index
    %c0_2 = arith.constant 0 : index
    %c0_3 = arith.constant 0 : index
    %1 = vector.load %arg2[%c0_1, %c0_2, %c0_3] : memref<1x1x8xf32, #tpu.memory_space<vmem>>, vector<1x1x8xf32>
    %c0_4 = arith.constant 0 : index
    %c0_5 = arith.constant 0 : index
    %2 = vector.load %arg3[%c0_4, %c0_5] : memref<32x192xbf16, #tpu.memory_space<vmem>>, vector<32x192xbf16>
    %3 = vector.extract_strided_slice %2 {offsets = [0, 0], sizes = [32, 96], strides = [1, 1]} : vector<32x192xbf16> to vector<32x96xbf16>
    %4 = vector.extract_strided_slice %2 {offsets = [0, 96], sizes = [32, 32], strides = [1, 1]} : vector<32x192xbf16> to vector<32x32xbf16>
    %5 = vector.extract_strided_slice %2 {offsets = [0, 128], sizes = [32, 64], strides = [1, 1]} : vector<32x192xbf16> to vector<32x64xbf16>
    %c0_6 = arith.constant 0 : index
    %c0_7 = arith.constant 0 : index
    %6 = vector.load %arg5[%c0_6, %c0_7] : memref<8x128xf32, #tpu.memory_space<vmem>>, vector<8x128xf32>
    %7 = vector.extract_strided_slice %6 {offsets = [0, 0], sizes = [1, 96], strides = [1, 1]} : vector<8x128xf32> to vector<1x96xf32>
    %8 = vector.extract_strided_slice %6 {offsets = [1, 0], sizes = [1, 64], strides = [1, 1]} : vector<8x128xf32> to vector<1x64xf32>
    %9 = vector.extract_strided_slice %6 {offsets = [2, 0], sizes = [1, 32], strides = [1, 1]} : vector<8x128xf32> to vector<1x32xf32>
    %10 = vector.extract_strided_slice %6 {offsets = [3, 0], sizes = [1, 32], strides = [1, 1]} : vector<8x128xf32> to vector<1x32xf32>
    %11 = vector.extract_strided_slice %6 {offsets = [4, 0], sizes = [1, 32], strides = [1, 1]} : vector<8x128xf32> to vector<1x32xf32>
    %12 = vector.extract_strided_slice %6 {offsets = [5, 0], sizes = [1, 32], strides = [1, 1]} : vector<8x128xf32> to vector<1x32xf32>
    %13 = vector.extract_strided_slice %6 {offsets = [6, 0], sizes = [1, 32], strides = [1, 1]} : vector<8x128xf32> to vector<1x32xf32>
    %14 = vector.extract_strided_slice %6 {offsets = [7, 0], sizes = [1, 32], strides = [1, 1]} : vector<8x128xf32> to vector<1x32xf32>
    %15 = arith.truncf %0 : vector<8x32xf32> to vector<8x32xbf16>
    %cst = arith.constant dense<0.000000e+00> : vector<8x96xf32>
    %16 = tpu.matmul %15, %3, %cst {dimension_numbers = #tpu.dot_dimension_numbers<[1], [0], [0], [1], [0, 0, 1, 1], [], []>} : vector<8x32xbf16>, vector<32x96xbf16>, vector<8x96xf32> -> vector<8x96xf32>
    %17 = vector.broadcast %7 : vector<1x96xf32> to vector<8x96xf32>
    %18 = arith.addf %16, %17 : vector<8x96xf32>
    %19 = vector.extract_strided_slice %18 {offsets = [0, 0], sizes = [8, 8], strides = [1, 1]} : vector<8x96xf32> to vector<8x8xf32>
    %20 = vector.extract_strided_slice %18 {offsets = [0, 8], sizes = [8, 8], strides = [1, 1]} : vector<8x96xf32> to vector<8x8xf32>
    %21 = vector.extract_strided_slice %18 {offsets = [0, 16], sizes = [8, 8], strides = [1, 1]} : vector<8x96xf32> to vector<8x8xf32>
    %22 = vector.extract_strided_slice %18 {offsets = [0, 24], sizes = [8, 8], strides = [1, 1]} : vector<8x96xf32> to vector<8x8xf32>
    %23 = vector.shape_cast %19 : vector<8x8xf32> to vector<1x8x8xf32>
    %24 = vector.shape_cast %20 : vector<8x8xf32> to vector<1x8x8xf32>
    %25 = vector.shape_cast %21 : vector<8x8xf32> to vector<1x8x8xf32>
    %26 = vector.shape_cast %22 : vector<8x8xf32> to vector<1x8x8xf32>
    %27 = tpu.concatenate %23, %24, %25, %26 in 0 : vector<1x8x8xf32>, vector<1x8x8xf32>, vector<1x8x8xf32>, vector<1x8x8xf32> -> vector<4x8x8xf32>
    %28 = vector.extract_strided_slice %18 {offsets = [0, 32], sizes = [8, 8], strides = [1, 1]} : vector<8x96xf32> to vector<8x8xf32>
    %29 = vector.extract_strided_slice %18 {offsets = [0, 40], sizes = [8, 8], strides = [1, 1]} : vector<8x96xf32> to vector<8x8xf32>
    %30 = vector.extract_strided_slice %18 {offsets = [0, 48], sizes = [8, 8], strides = [1, 1]} : vector<8x96xf32> to vector<8x8xf32>
    %31 = vector.extract_strided_slice %18 {offsets = [0, 56], sizes = [8, 8], strides = [1, 1]} : vector<8x96xf32> to vector<8x8xf32>
    %32 = vector.shape_cast %28 : vector<8x8xf32> to vector<1x8x8xf32>
    %33 = vector.shape_cast %29 : vector<8x8xf32> to vector<1x8x8xf32>
    %34 = vector.shape_cast %30 : vector<8x8xf32> to vector<1x8x8xf32>
    %35 = vector.shape_cast %31 : vector<8x8xf32> to vector<1x8x8xf32>
    %36 = tpu.concatenate %32, %33, %34, %35 in 0 : vector<1x8x8xf32>, vector<1x8x8xf32>, vector<1x8x8xf32>, vector<1x8x8xf32> -> vector<4x8x8xf32>
    %37 = vector.extract_strided_slice %18 {offsets = [0, 64], sizes = [8, 8], strides = [1, 1]} : vector<8x96xf32> to vector<8x8xf32>
    %38 = vector.extract_strided_slice %18 {offsets = [0, 72], sizes = [8, 8], strides = [1, 1]} : vector<8x96xf32> to vector<8x8xf32>
    %39 = vector.extract_strided_slice %18 {offsets = [0, 80], sizes = [8, 8], strides = [1, 1]} : vector<8x96xf32> to vector<8x8xf32>
    %40 = vector.extract_strided_slice %18 {offsets = [0, 88], sizes = [8, 8], strides = [1, 1]} : vector<8x96xf32> to vector<8x8xf32>
    %41 = vector.shape_cast %37 : vector<8x8xf32> to vector<1x8x8xf32>
    %42 = vector.shape_cast %38 : vector<8x8xf32> to vector<1x8x8xf32>
    %43 = vector.shape_cast %39 : vector<8x8xf32> to vector<1x8x8xf32>
    %44 = vector.shape_cast %40 : vector<8x8xf32> to vector<1x8x8xf32>
    %45 = tpu.concatenate %41, %42, %43, %44 in 0 : vector<1x8x8xf32>, vector<1x8x8xf32>, vector<1x8x8xf32>, vector<1x8x8xf32> -> vector<4x8x8xf32>
    %46 = arith.truncf %27 : vector<4x8x8xf32> to vector<4x8x8xbf16>
    %47 = arith.truncf %36 : vector<4x8x8xf32> to vector<4x8x8xbf16>
    "tpu.trace_start"() <{level = 10 : i32, message = "hqd,hkd->hqk"}> : () -> ()
    %cst_8 = arith.constant dense<0.000000e+00> : vector<4x8x8xf32>
    %48 = tpu.matmul %46, %47, %cst_8 {dimension_numbers = #tpu.dot_dimension_numbers<[2], [2], [1], [1], [0, 0, 0, 1, 1, 1], [0], [0]>} : vector<4x8x8xbf16>, vector<4x8x8xbf16>, vector<4x8x8xf32> -> vector<4x8x8xf32>
    "tpu.trace_stop"() : () -> ()
    %49 = vector.broadcast %1 : vector<1x1x8xf32> to vector<4x8x8xf32>
    %50 = arith.mulf %48, %49 : vector<4x8x8xf32>
    %cst_9 = arith.constant dense<0xFF800000> : vector<4x8xf32>
    %51 = vector.multi_reduction <maximumf>, %50, %cst_9 [2] : vector<4x8x8xf32> to vector<4x8xf32>
    %52 = vector.shape_cast %51 : vector<4x8xf32> to vector<4x8x1xf32>
    %53 = vector.broadcast %52 : vector<4x8x1xf32> to vector<4x8x8xf32>
    %54 = arith.subf %50, %53 : vector<4x8x8xf32>
    %55 = math.exp %54 : vector<4x8x8xf32>
    %cst_10 = arith.constant dense<0.000000e+00> : vector<4x8xf32>
    %56 = vector.multi_reduction <add>, %55, %cst_10 [2] : vector<4x8x8xf32> to vector<4x8xf32>
    %57 = vector.shape_cast %56 : vector<4x8xf32> to vector<4x8x1xf32>
    %58 = tpu.reciprocal %57 {approx = true} : vector<4x8x1xf32> -> vector<4x8x1xf32>
    %59 = vector.broadcast %58 : vector<4x8x1xf32> to vector<4x8x8xf32>
    %60 = arith.mulf %55, %59 : vector<4x8x8xf32>
    %61 = arith.truncf %60 : vector<4x8x8xf32> to vector<4x8x8xbf16>
    %62 = arith.truncf %45 : vector<4x8x8xf32> to vector<4x8x8xbf16>
    "tpu.trace_start"() <{level = 10 : i32, message = "hqk,hkd->hqd"}> : () -> ()
    %cst_11 = arith.constant dense<0.000000e+00> : vector<4x8x8xf32>
    %63 = tpu.matmul %61, %62, %cst_11 {dimension_numbers = #tpu.dot_dimension_numbers<[2], [1], [1], [2], [0, 0, 0, 1, 1, 2], [0], [0]>} : vector<4x8x8xbf16>, vector<4x8x8xbf16>, vector<4x8x8xf32> -> vector<4x8x8xf32>
    "tpu.trace_stop"() : () -> ()
    %64 = vector.extract_strided_slice %63 {offsets = [0, 0, 0], sizes = [1, 8, 8], strides = [1, 1, 1]} : vector<4x8x8xf32> to vector<1x8x8xf32>
    %65 = vector.shape_cast %64 : vector<1x8x8xf32> to vector<8x8xf32>
    %66 = vector.extract_strided_slice %63 {offsets = [1, 0, 0], sizes = [1, 8, 8], strides = [1, 1, 1]} : vector<4x8x8xf32> to vector<1x8x8xf32>
    %67 = vector.shape_cast %66 : vector<1x8x8xf32> to vector<8x8xf32>
    %68 = vector.extract_strided_slice %63 {offsets = [2, 0, 0], sizes = [1, 8, 8], strides = [1, 1, 1]} : vector<4x8x8xf32> to vector<1x8x8xf32>
    %69 = vector.shape_cast %68 : vector<1x8x8xf32> to vector<8x8xf32>
    %70 = vector.extract_strided_slice %63 {offsets = [3, 0, 0], sizes = [1, 8, 8], strides = [1, 1, 1]} : vector<4x8x8xf32> to vector<1x8x8xf32>
    %71 = vector.shape_cast %70 : vector<1x8x8xf32> to vector<8x8xf32>
    %72 = tpu.concatenate %65, %67, %69, %71 in 1 : vector<8x8xf32>, vector<8x8xf32>, vector<8x8xf32>, vector<8x8xf32> -> vector<8x32xf32>
    %73 = arith.truncf %72 : vector<8x32xf32> to vector<8x32xbf16>
    %cst_12 = arith.constant dense<0.000000e+00> : vector<8x32xf32>
    %74 = tpu.matmul %73, %4, %cst_12 {dimension_numbers = #tpu.dot_dimension_numbers<[1], [0], [0], [1], [0, 0, 1, 1], [], []>} : vector<8x32xbf16>, vector<32x32xbf16>, vector<8x32xf32> -> vector<8x32xf32>
    %75 = vector.broadcast %9 : vector<1x32xf32> to vector<8x32xf32>
    %76 = arith.addf %74, %75 : vector<8x32xf32>
    %77 = arith.addf %76, %0 : vector<8x32xf32>
    %cst_13 = arith.constant dense<0.000000e+00> : vector<8xf32>
    %78 = vector.multi_reduction <add>, %77, %cst_13 [1] : vector<8x32xf32> to vector<8xf32>
    %79 = vector.shape_cast %78 : vector<8xf32> to vector<8x1xf32>
    %cst_14 = arith.constant 3.200000e+01 : f32
    %80 = vector.broadcast %cst_14 : f32 to vector<8x1xf32>
    %81 = arith.divf %79, %80 : vector<8x1xf32>
    %82 = vector.broadcast %81 : vector<8x1xf32> to vector<8x32xf32>
    %83 = arith.subf %77, %82 : vector<8x32xf32>
    %84 = arith.mulf %83, %83 : vector<8x32xf32>
    %cst_15 = arith.constant dense<0.000000e+00> : vector<8xf32>
    %85 = vector.multi_reduction <add>, %84, %cst_15 [1] : vector<8x32xf32> to vector<8xf32>
    %86 = vector.shape_cast %85 : vector<8xf32> to vector<8x1xf32>
    %cst_16 = arith.constant 3.200000e+01 : f32
    %87 = vector.broadcast %cst_16 : f32 to vector<8x1xf32>
    %88 = arith.divf %86, %87 : vector<8x1xf32>
    %cst_17 = arith.constant 9.99999996E-13 : f32
    %89 = vector.broadcast %cst_17 : f32 to vector<8x1xf32>
    %90 = arith.addf %88, %89 : vector<8x1xf32>
    %91 = math.rsqrt %90 : vector<8x1xf32>
    %92 = vector.broadcast %81 : vector<8x1xf32> to vector<8x32xf32>
    %93 = arith.subf %77, %92 : vector<8x32xf32>
    %94 = vector.broadcast %91 : vector<8x1xf32> to vector<8x32xf32>
    %95 = arith.mulf %93, %94 : vector<8x32xf32>
    %96 = vector.broadcast %11 : vector<1x32xf32> to vector<8x32xf32>
    %97 = arith.mulf %95, %96 : vector<8x32xf32>
    %98 = vector.broadcast %12 : vector<1x32xf32> to vector<8x32xf32>
    %99 = arith.addf %97, %98 : vector<8x32xf32>
    %100 = arith.truncf %99 : vector<8x32xf32> to vector<8x32xbf16>
    %cst_18 = arith.constant dense<0.000000e+00> : vector<8x64xf32>
    %101 = tpu.matmul %100, %5, %cst_18 {dimension_numbers = #tpu.dot_dimension_numbers<[1], [0], [0], [1], [0, 0, 1, 1], [], []>} : vector<8x32xbf16>, vector<32x64xbf16>, vector<8x64xf32> -> vector<8x64xf32>
    %102 = vector.broadcast %8 : vector<1x64xf32> to vector<8x64xf32>
    %103 = arith.addf %101, %102 : vector<8x64xf32>
    %cst_19 = arith.constant 5.000000e-01 : f32
    %104 = vector.broadcast %cst_19 : f32 to vector<8x64xf32>
    %105 = arith.mulf %104, %103 : vector<8x64xf32>
    %cst_20 = arith.constant 0.707106769 : f32
    %106 = vector.broadcast %cst_20 : f32 to vector<8x64xf32>
    %107 = arith.mulf %103, %106 : vector<8x64xf32>
    %108 = math.erf %107 : vector<8x64xf32>
    %cst_21 = arith.constant 1.000000e+00 : f32
    %109 = vector.broadcast %cst_21 : f32 to vector<8x64xf32>
    %110 = arith.addf %109, %108 : vector<8x64xf32>
    %111 = arith.mulf %105, %110 : vector<8x64xf32>
    %112 = arith.truncf %111 : vector<8x64xf32> to vector<8x64xbf16>
    %c0_22 = arith.constant 0 : index
    %c0_23 = arith.constant 0 : index
    %113 = vector.load %arg4[%c0_22, %c0_23] : memref<64x32xbf16, #tpu.memory_space<vmem>>, vector<64x32xbf16>
    %cst_24 = arith.constant dense<0.000000e+00> : vector<8x32xf32>
    %114 = tpu.matmul %112, %113, %cst_24 {dimension_numbers = #tpu.dot_dimension_numbers<[1], [0], [0], [1], [0, 0, 1, 1], [], []>} : vector<8x64xbf16>, vector<64x32xbf16>, vector<8x32xf32> -> vector<8x32xf32>
    %115 = vector.broadcast %10 : vector<1x32xf32> to vector<8x32xf32>
    %116 = arith.addf %114, %115 : vector<8x32xf32>
    %117 = arith.addf %116, %99 : vector<8x32xf32>
    %cst_25 = arith.constant dense<0.000000e+00> : vector<8xf32>
    %118 = vector.multi_reduction <add>, %117, %cst_25 [1] : vector<8x32xf32> to vector<8xf32>
    %119 = vector.shape_cast %118 : vector<8xf32> to vector<8x1xf32>
    %cst_26 = arith.constant 3.200000e+01 : f32
    %120 = vector.broadcast %cst_26 : f32 to vector<8x1xf32>
    %121 = arith.divf %119, %120 : vector<8x1xf32>
    %122 = vector.broadcast %121 : vector<8x1xf32> to vector<8x32xf32>
    %123 = arith.subf %117, %122 : vector<8x32xf32>
    %124 = arith.mulf %123, %123 : vector<8x32xf32>
    %cst_27 = arith.constant dense<0.000000e+00> : vector<8xf32>
    %125 = vector.multi_reduction <add>, %124, %cst_27 [1] : vector<8x32xf32> to vector<8xf32>
    %126 = vector.shape_cast %125 : vector<8xf32> to vector<8x1xf32>
    %cst_28 = arith.constant 3.200000e+01 : f32
    %127 = vector.broadcast %cst_28 : f32 to vector<8x1xf32>
    %128 = arith.divf %126, %127 : vector<8x1xf32>
    %cst_29 = arith.constant 9.99999996E-13 : f32
    %129 = vector.broadcast %cst_29 : f32 to vector<8x1xf32>
    %130 = arith.addf %128, %129 : vector<8x1xf32>
    %131 = math.rsqrt %130 : vector<8x1xf32>
    %132 = vector.broadcast %121 : vector<8x1xf32> to vector<8x32xf32>
    %133 = arith.subf %117, %132 : vector<8x32xf32>
    %134 = vector.broadcast %131 : vector<8x1xf32> to vector<8x32xf32>
    %135 = arith.mulf %133, %134 : vector<8x32xf32>
    %136 = vector.broadcast %13 : vector<1x32xf32> to vector<8x32xf32>
    %137 = arith.mulf %135, %136 : vector<8x32xf32>
    %138 = vector.broadcast %14 : vector<1x32xf32> to vector<8x32xf32>
    %139 = arith.addf %137, %138 : vector<8x32xf32>
    %c0_30 = arith.constant 0 : index
    %c0_31 = arith.constant 0 : index
    %140 = vector.load %arg6[%c0_30, %c0_31] : memref<8x32xf32, #tpu.memory_space<vmem>>, vector<8x32xf32>
    tpu.vector_store %arg6[%c0_30, %c0_31], %139 {strides = array<i32>} : memref<8x32xf32, #tpu.memory_space<vmem>>, vector<8x32xf32>,
    return
  }
  func.func @transform_0(%arg0: i32) -> (i32, i32) {
    %c0_i32 = arith.constant 0 : i32
    %c0_i32_0 = arith.constant 0 : i32
    return %arg0, %c0_i32 : i32, i32
  }
  func.func @transform_1(%arg0: i32) -> (i32, i32, i32) {
    %c0_i32 = arith.constant 0 : i32
    %c0_i32_0 = arith.constant 0 : i32
    %c0_i32_1 = arith.constant 0 : i32
    return %arg0, %c0_i32, %c0_i32_0 : i32, i32, i32
  }
  func.func @transform_2(%arg0: i32) -> (i32, i32) {
    %c0_i32 = arith.constant 0 : i32
    %c0_i32_0 = arith.constant 0 : i32
    %c0_i32_1 = arith.constant 0 : i32
    return %c0_i32, %c0_i32_0 : i32, i32
  }
  func.func @transform_3(%arg0: i32) -> (i32, i32) {
    %c0_i32 = arith.constant 0 : i32
    %c0_i32_0 = arith.constant 0 : i32
    %c0_i32_1 = arith.constant 0 : i32
    return %c0_i32, %c0_i32_0 : i32, i32
  }
  func.func @transform_4(%arg0: i32) -> (i32, i32) {
    %c0_i32 = arith.constant 0 : i32
    %c0_i32_0 = arith.constant 0 : i32
    %c0_i32_1 = arith.constant 0 : i32
    return %c0_i32, %c0_i32_0 : i32, i32
  }
  func.func @transform_5(%arg0: i32) -> (i32, i32) {
    %c0_i32 = arith.constant 0 : i32
    %c0_i32_0 = arith.constant 0 : i32
    return %arg0, %c0_i32 : i32, i32
  }
}

</mosaic_0001>

<llo_original>
// kernel: tpu_custom_call.1
$region0: #{tpu_custom_call.1}
  #allocation0 [shape = 'u32[]', space=smem, size = 0x4, offset = 0x4, fixed_abs, tag = 'smem constant byte address 0x4 - core index']
  #allocation1 [shape = 'u32[144,128]{1,0:T(1,128)}', space=vmem, size = 0x12000, scoped, tag = 'internal scratch']
  %s0 = inlined_call_operand.vmem [shape: f32[16,32], index: 0, kind: input, shape index: {}]
  %s1 = inlined_call_operand.vmem [shape: f32[2,1,8], index: 1, kind: input, shape index: {}]
  %s2 = inlined_call_operand.vmem [shape: bf16[32,192], index: 2, kind: input, shape index: {}]
  %s3 = inlined_call_operand.vmem [shape: bf16[64,32], index: 3, kind: input, shape index: {}]
  %s4 = inlined_call_operand.hbm [shape: f32[8,128], index: 4, kind: input, shape index: {}]
  %s5 = inlined_call_operand.hbm [shape: f32[16,32], index: 5, kind: output, shape index: {}]
  %s6 = sld [smem:[#allocation0]]
  $region57: #{tpu_custom_call.1} parent=0
    _
  %s8 = ssub.s32 1, %s6
  %s9 = scalar_select 0, %s8, %s6
  $region1: #{tpu_custom_call.1} parent=0
    #allocation2 [shape = 'u8[4096]{0}', space=vmem, size = 0x1000, scoped, tag = 'input window, operand 4, single buffered']
    #allocation3 [shape = 's32[2]{0}', space=sflag, size = 0x8, scoped, tag = 'scoped memory for tpu_custom_call.1']
    #allocation4 [shape = 's32[2]{0}', space=sflag, size = 0x8, scoped, tag = 'scoped memory for tpu_custom_call.1']
    #allocation5 [shape = 'u8[8192]{0}', space=vmem, size = 0x2000, scoped, tag = 'output window, operand 0']
    %10 = vsyncpa [#allocation3], 0
    %11 = vsyncpa [#allocation4], 0
    %s12 = scalar_lea.sflag [#allocation4], 1
    %13 = vsyncpa %s12, 0
    loop: start=0, step=1, limit=4
    $region2: #{tpu_custom_call.1} parent=1 // loop_pre_header
      _
    $region3: #{tpu_custom_call.1} parent=1 // loop_header
      %s15 = sphi 0, %s19
      %p16 = scmp.ge.s32.totalorder %s15, 4
      %s25 = sphi 0, %s27
      %s28 = sphi 0, %s25
      %s29 = sphi 0, %s28
      %s45 = sphi 0, %s29
      %s51 = sphi 0, %s53
      %s54 = sphi 0, %s51
      %s55 = sphi 0, %s54
      %s71 = sphi 0, %s55
      %s75 = sphi 0, %s75
      %s77 = sphi 0, %s75
      %s78 = sphi 0, %s77
      %s92 = sphi 0, %s78
      %s96 = sphi 0, %s96
      %s98 = sphi 0, %s96
      %s99 = sphi 0, %s98
      %s113 = sphi 0, %s99
      %s117 = sphi 0, %s117
      %s119 = sphi 0, %s117
      %s120 = sphi 0, %s119
      %s134 = sphi 0, %s120
      %s140 = sphi 0, %s142
      %s143 = sphi 0, %s140
      %s144 = sphi 0, %s143
      %s160 = sphi 0, %s144
    $region4: #{tpu_custom_call.1} parent=1 // loop_header_branch
      %18 = sbr.rel (%p16) target = $region8
    $region5: #{tpu_custom_call.1} parent=1 // loop_body
      %s20 = ssub.s32 %s15, 1
      %s21 = ssub.s32 %s15, 2
      %s22 = sadd.s32 %s15, 1
      %s23 = ssub.s32 %s15, %s22
      %p24 = scmp.eq.s32.totalorder %s23, 0
      %s26 = sadd.s32 %s25, 1
      %s27 = scalar_select %p24, %s25, %s26
      %p30 = pneg %p24
      %p31 = scmp.eq.s32.totalorder %s15, 1
      %p32 = por %p30, %p31
      %p33 = scmp.ne.s32.totalorder %s25, %s28
      %p34 = scmp.eq.s32.totalorder %s15, 0
      %p35 = por %p33, %p34
      %p36 = scmp.ne.s32.totalorder %s25, %s28
      %p37 = scmp.eq.s32.totalorder %s20, 1
      %p38 = por %p36, %p37
      %p39 = scmp.ne.s32.totalorder %s28, %s29
      %p40 = scmp.eq.s32.totalorder %s20, 0
      %p41 = por %p39, %p40
      %p42 = scmp.ne.s32.totalorder %s28, %s29
      %p43 = scmp.eq.s32.totalorder %s21, 1
      %p44 = por %p42, %p43
      %p46 = scmp.ne.s32.totalorder %s29, %s45
      %p47 = scmp.eq.s32.totalorder %s21, 0
      %p48 = por %p46, %p47
      %s49 = ssub.s32 %s15, %s22
      %p50 = scmp.eq.s32.totalorder %s49, 0
      %s52 = sadd.s32 %s51, 1
      %s53 = scalar_select %p50, %s51, %s52
      %p56 = pneg %p50
      %p57 = scmp.eq.s32.totalorder %s15, 1
      %p58 = por %p56, %p57
      %p59 = scmp.ne.s32.totalorder %s51, %s54
      %p60 = scmp.eq.s32.totalorder %s15, 0
      %p61 = por %p59, %p60
      %p62 = scmp.ne.s32.totalorder %s51, %s54
      %p63 = scmp.eq.s32.totalorder %s20, 1
      %p64 = por %p62, %p63
      %p65 = scmp.ne.s32.totalorder %s54, %s55
      %p66 = scmp.eq.s32.totalorder %s20, 0
      %p67 = por %p65, %p66
      %p68 = scmp.ne.s32.totalorder %s54, %s55
      %p69 = scmp.eq.s32.totalorder %s21, 1
      %p70 = por %p68, %p69
      %p72 = scmp.ne.s32.totalorder %s55, %s71
      %p73 = scmp.eq.s32.totalorder %s21, 0
      %p74 = por %p72, %p73
      %s76 = sadd.s32 %s75, 1
      %p79 = scmp.eq.s32.totalorder %s15, 1
      %p80 = scmp.ne.s32.totalorder %s75, %s77
      %p81 = scmp.eq.s32.totalorder %s15, 0
      %p82 = por %p80, %p81
      %p83 = scmp.ne.s32.totalorder %s75, %s77
      %p84 = scmp.eq.s32.totalorder %s20, 1
      %p85 = por %p83, %p84
      %p86 = scmp.ne.s32.totalorder %s77, %s78
      %p87 = scmp.eq.s32.totalorder %s20, 0
      %p88 = por %p86, %p87
      %p89 = scmp.ne.s32.totalorder %s77, %s78
      %p90 = scmp.eq.s32.totalorder %s21, 1
      %p91 = por %p89, %p90
      %p93 = scmp.ne.s32.totalorder %s78, %s92
      %p94 = scmp.eq.s32.totalorder %s21, 0
      %p95 = por %p93, %p94
      %s97 = sadd.s32 %s96, 1
      %p100 = scmp.eq.s32.totalorder %s15, 1
      %p101 = scmp.ne.s32.totalorder %s96, %s98
      %p102 = scmp.eq.s32.totalorder %s15, 0
      %p103 = por %p101, %p102
      %p104 = scmp.ne.s32.totalorder %s96, %s98
      %p105 = scmp.eq.s32.totalorder %s20, 1
      %p106 = por %p104, %p105
      %p107 = scmp.ne.s32.totalorder %s98, %s99
      %p108 = scmp.eq.s32.totalorder %s20, 0
      %p109 = por %p107, %p108
      %p110 = scmp.ne.s32.totalorder %s98, %s99
      %p111 = scmp.eq.s32.totalorder %s21, 1
      %p112 = por %p110, %p111
      %p114 = scmp.ne.s32.totalorder %s99, %s113
      %p115 = scmp.eq.s32.totalorder %s21, 0
      %p116 = por %p114, %p115
      %s118 = sadd.s32 %s117, 1
      %p121 = scmp.eq.s32.totalorder %s15, 1
      %p122 = scmp.ne.s32.totalorder %s117, %s119
      %p123 = scmp.eq.s32.totalorder %s15, 0
      %p124 = por %p122, %p123
      %p125 = scmp.ne.s32.totalorder %s117, %s119
      %p126 = scmp.eq.s32.totalorder %s20, 1
      %p127 = por %p125, %p126
      %p128 = scmp.ne.s32.totalorder %s119, %s120
      %p129 = scmp.eq.s32.totalorder %s20, 0
      %p130 = por %p128, %p129
      %p131 = scmp.ne.s32.totalorder %s119, %s120
      %p132 = scmp.eq.s32.totalorder %s21, 1
      %p133 = por %p131, %p132
      %p135 = scmp.ne.s32.totalorder %s120, %s134
      %p136 = scmp.eq.s32.totalorder %s21, 0
      %p137 = por %p135, %p136
      %s138 = ssub.s32 %s15, %s22
      %p139 = scmp.eq.s32.totalorder %s138, 0
      %s141 = sadd.s32 %s140, 1
      %s142 = scalar_select %p139, %s140, %s141
      %p145 = pneg %p139
      %p146 = scmp.eq.s32.totalorder %s15, 1
      %p147 = por %p145, %p146
      %p148 = scmp.ne.s32.totalorder %s140, %s143
      %p149 = scmp.eq.s32.totalorder %s15, 0
      %p150 = por %p148, %p149
      %p151 = scmp.ne.s32.totalorder %s140, %s143
      %p152 = scmp.eq.s32.totalorder %s20, 1
      %p153 = por %p151, %p152
      %p154 = scmp.ne.s32.totalorder %s143, %s144
      %p155 = scmp.eq.s32.totalorder %s20, 0
      %p156 = por %p154, %p155
      %p157 = scmp.ne.s32.totalorder %s143, %s144
      %p158 = scmp.eq.s32.totalorder %s21, 1
      %p159 = por %p157, %p158
      %p161 = scmp.ne.s32.totalorder %s144, %s160
      %p162 = scmp.eq.s32.totalorder %s21, 0
      %p163 = por %p161, %p162
      %p164 = scmp.le.s32.totalorder 1, %s15
      %p165 = scmp.lt.s32.totalorder %s15, 3
      %p166 = pnand %p164, %p165
      %p167 = pneg %p166
      // Predicated region
      $region9: #{tpu_custom_call.1} parent=5 // pred_check
        _
      $region10: #{tpu_custom_call.1} parent=5 // pred_check_branch
        %169 = sbr.rel (%p166) target = $region12
      $region11: #{tpu_custom_call.1} parent=5 // pred_region
        %s170 = ssub.s32 %s15, 1
        // Predicated region
        $region13: #{tpu_custom_call.1} parent=11 // pred_check
          %p171 = pneg %p88
        $region14: #{tpu_custom_call.1} parent=11 // pred_check_branch
          %173 = sbr.rel (%p171) target = $region16
        $region15: #{tpu_custom_call.1} parent=11 // pred_region
          _
        $region16: #{tpu_custom_call.1} parent=11 // pred_fallthru
          _
        // Predicated region
        $region17: #{tpu_custom_call.1} parent=11 // pred_check
          %p174 = pneg %p109
        $region18: #{tpu_custom_call.1} parent=11 // pred_check_branch
          %176 = sbr.rel (%p174) target = $region20
        $region19: #{tpu_custom_call.1} parent=11 // pred_region
          _
        $region20: #{tpu_custom_call.1} parent=11 // pred_fallthru
          _
        // Predicated region
        $region21: #{tpu_custom_call.1} parent=11 // pred_check
          %p177 = pneg %p130
        $region22: #{tpu_custom_call.1} parent=11 // pred_check_branch
          %179 = sbr.rel (%p177) target = $region24
        $region23: #{tpu_custom_call.1} parent=11 // pred_region
          %s181 = ssub.s32 128, 128
          %182 = vsyncadd [#allocation3], %s181
          %s184 = sshll.u32 [#allocation2], 4
          %s185 = int_to_ptr.vmem [resolvable:$true] %s184
          %187 = dma.hbm_to_vmem [thread:$0]  %s4, 128, %s185, [#allocation3]
        $region24: #{tpu_custom_call.1} parent=11 // pred_fallthru
          _
      $region12: #{tpu_custom_call.1} parent=5 // pred_fallthru
        _
      %p188 = scmp.lt.s32.totalorder %s15, 2
      // Predicated region
      $region25: #{tpu_custom_call.1} parent=5 // pred_check
        %p189 = pneg %p188
      $region26: #{tpu_custom_call.1} parent=5 // pred_check_branch
        %191 = sbr.rel (%p189) target = $region28
      $region27: #{tpu_custom_call.1} parent=5 // pred_region
        // Predicated region
        $region29: #{tpu_custom_call.1} parent=27 // pred_check
          %p192 = pneg %p35
        $region30: #{tpu_custom_call.1} parent=27 // pred_check_branch
          %194 = sbr.rel (%p192) target = $region32
        $region31: #{tpu_custom_call.1} parent=27 // pred_region
          %p195 = scmp.lt.s32.totalorder %s15, 1
          %s196 = scalar_select %p195, %s15, 1
          %s197 = smul.addr %s196, 8
          %s198 = scalar_lea.vmem %s0, %s197
        $region32: #{tpu_custom_call.1} parent=27 // pred_fallthru
          _
        // Predicated region
        $region33: #{tpu_custom_call.1} parent=27 // pred_check
          %p199 = pneg %p61
        $region34: #{tpu_custom_call.1} parent=27 // pred_check_branch
          %201 = sbr.rel (%p199) target = $region36
        $region35: #{tpu_custom_call.1} parent=27 // pred_region
          %p202 = scmp.lt.s32.totalorder %s15, 1
          %s203 = scalar_select %p202, %s15, 1
          %s204 = scalar_lea.vmem %s1, %s203
        $region36: #{tpu_custom_call.1} parent=27 // pred_fallthru
          _
      $region28: #{tpu_custom_call.1} parent=5 // pred_fallthru
        _
      %p205 = scmp.le.s32.totalorder 1, %s15
      %p206 = scmp.lt.s32.totalorder %s15, 3
      %p207 = pnand %p205, %p206
      %p208 = pneg %p207
      // Predicated region
      $region37: #{tpu_custom_call.1} parent=5 // pred_check
        _
      $region38: #{tpu_custom_call.1} parent=5 // pred_check_branch
        %210 = sbr.rel (%p207) target = $region40
      $region39: #{tpu_custom_call.1} parent=5 // pred_region
        %s211 = ssub.s32 %s15, 1
        // Predicated region
        $region41: #{tpu_custom_call.1} parent=39 // pred_check
          %p212 = pneg %p130
        $region42: #{tpu_custom_call.1} parent=39 // pred_check_branch
          %214 = sbr.rel (%p212) target = $region44
        $region43: #{tpu_custom_call.1} parent=39 // pred_region
          %215 = dma.done [#allocation3], 128
        $region44: #{tpu_custom_call.1} parent=39 // pred_fallthru
          _
        %p216 = scmp.lt.s32.totalorder %s20, 1
        %s217 = scalar_select %p216, %s20, 1
        %s218 = smul.addr %s217, 8
        %s219 = scalar_lea.vmem %s0, %s218
        %p220 = pneg %p41
        %p221 = pneg %p38
        %p222 = scmp.lt.s32.totalorder %s20, 1
        %s223 = scalar_select %p222, %s20, 1
        %s224 = scalar_lea.vmem %s1, %s223
        %p225 = pneg %p67
        %p226 = pneg %p64
        %p227 = pneg %p88
        %p228 = pneg %p85
        %p229 = pneg %p109
        %p230 = pneg %p106
        %p231 = pneg %p130
        %p232 = pneg %p127
        %p233 = pneg %p156
        %p234 = pneg %p153
        %s235 = sand.u32 %s143, 1
        %s236 = scalar_lea.sflag [#allocation4], %s235
        %s237 = sand.u32 %s143, 1
        %s238 = smul.addr %s237, 8
        %s239 = scalar_lea.vmem [#allocation5], %s238
        %p240 = scmp.lt.s32.totalorder %s20, 1
        %s241 = scalar_select %p240, %s20, 1
        %s242 = smul.addr %s241, 8
        %s243 = scalar_lea.vmem %s0, %s242
        %p244 = scmp.lt.s32.totalorder %s20, 1
        %s245 = scalar_select %p244, %s20, 1
        %s246 = scalar_lea.vmem %s1, %s245
        %v248 = vld [vmem:[%s243] sm:$0xff]
        %v249 = vld [vmem:[%s246] sm:$0x1]
        %v250 = vld [vmem:[%s2] sm:$0xff]
        %v251 = vld [vmem:[%s2 + $0x8] sm:$0xff]
        %v252 = vld [vmem:[%s2 + $0x10] sm:$0xff]
        %v253 = vld [vmem:[%s2 + $0x18] sm:$0xff]
        %v254 = vld [vmem:[#allocation2] sm:$0xff]
        %v255 = vpack.c.bf16 %v248, %v248
        %v256 = vlaneseq
        %v257 = vshrl.u32 %v256, 7
        %v258 = vsub.s32 0, %v257
        %v259 = vrot.slane %v254, %v258
        %v264 = vunpack.c.l.b16 %v250
        %v265 = vunpack.c.l.b16 %v251
        %v266 = vunpack.c.l.b16 %v252
        %v267 = vunpack.c.l.b16 %v253
        %v268 = vpack.c.b16 %v265, %v264
        %v269 = vpack.c.b16 %v267, %v266
        %vm272 = vcmask 261120
        %v274 = vsel %vm272, %v255, 0
        %276 = vmatprep.subr.bf16.mxu0 0
        %277 = vmatpush1.bf16.msra.mxu0 0
        %278 = vmatprep.subr.bf16.mxu0 0
        %279 = vmatpush1.bf16.msra.mxu0 0
        %280 = vmatprep.subr.bf16.mxu0 0
        %281 = vmatpush1.bf16.msra.mxu0 0
        %282 = vmatprep.subr.bf16.mxu0 0
        %283 = vmatpush1.bf16.msra.mxu0 0
        %284 = vmatprep.subr.bf16.mxu0 0
        %285 = vmatpush1.bf16.msra.mxu0 0
        %286 = vmatprep.subr.bf16.mxu0 0
        %287 = vmatpush1.bf16.msra.mxu0 0
        %288 = vmatprep.subr.bf16.mxu0 0
        %289 = vmatpush1.bf16.msra.mxu0 %v269
        %290 = vmatprep.subr.bf16.mxu0 0
        %291 = vmatpush1.bf16.msra.mxu0 %v268
        %292 = vmatprep.subr.bf16.mxu0 0
        %293 = vmatpush2.bf16.msra.mxu0 0
        %294 = vmatprep.subr.bf16.mxu0 0
        %295 = vmatpush2.bf16.msra.mxu0 0
        %296 = vmatprep.subr.bf16.mxu0 0
        %297 = vmatpush2.bf16.msra.mxu0 0
        %298 = vmatprep.subr.bf16.mxu0 0
        %299 = vmatpush2.bf16.msra.mxu0 0
        %300 = vmatprep.subr.bf16.mxu0 0
        %301 = vmatpush2.bf16.msra.mxu0 0
        %302 = vmatprep.subr.bf16.mxu0 0
        %303 = vmatpush2.bf16.msra.mxu0 0
        %304 = vmatprep.subr.bf16.mxu0 0
        %305 = vmatpush2.bf16.msra.mxu0 0
        %306 = vmatprep.subr.bf16.mxu0 0
        %307 = vmatpush2.bf16.msra.mxu0 0
        %308 = vmatprep.mubr.bf16.mxu0 0
        %309 = vmatmul.mubr.bf16.gmra.mxu0 %v274
        %v310 = vpop.f32.mrf.mxu0
        %v311 = vadd.f32 %v259, %v310
        %v312 = vpop.f32.mrf.mxu0
        %v313 = vpop.f32.mrf.mxu0
        %v314 = vpop.f32.mrf.mxu0
        %315 = vdwg.mxu0
        %317 = vrot.lane.b32.xlu0 %v311, 120
        %v318 = vpop.permute.xlu0 %317
        %320 = vrot.lane.b32.xlu0 %v311, 112
        %v321 = vpop.permute.xlu0 %320
        %323 = vrot.lane.b32.xlu0 %v311, 104
        %v324 = vpop.permute.xlu0 %323
        %v326 = vpack.c.bf16 %v311, %v311
        %v327 = vpack.c.bf16 %v318, %v318
        %v328 = vpack.c.bf16 %v321, %v321
        %v329 = vpack.c.bf16 %v324, %v324
        %331 = vrot.lane.b32.xlu0 %v326, 96
        %v332 = vpop.permute.xlu0 %331
        %vm333 = vcmask 64512
        %v335 = vsel %vm333, %v326, 0
        %v338 = vsel %vm333, %v332, 0
        %340 = vmatprep.subr.bf16.mxu0 0
        %341 = vmatpush1.bf16.xpose.msra.mxu0 0
        %342 = vmatprep.subr.bf16.mxu0 0
        %343 = vmatpush1.bf16.xpose.msra.mxu0 0
        %344 = vmatprep.subr.bf16.mxu0 0
        %345 = vmatpush1.bf16.xpose.msra.mxu0 0
        %346 = vmatprep.subr.bf16.mxu0 0
        %347 = vmatpush1.bf16.xpose.msra.mxu0 0
        %348 = vmatprep.subr.bf16.mxu0 0
        %349 = vmatpush1.bf16.xpose.msra.mxu0 0
        %350 = vmatprep.subr.bf16.mxu0 0
        %351 = vmatpush1.bf16.xpose.msra.mxu0 0
        %352 = vmatprep.subr.bf16.mxu0 0
        %353 = vmatpush1.bf16.xpose.msra.mxu0 0
        %354 = vmatprep.subr.bf16.mxu0 0
        %355 = vmatpush1.bf16.xpose.msra.mxu0 %v338
        %356 = vmatprep.subr.bf16.mxu0 0
        %357 = vmatpush2.bf16.xpose.msra.mxu0 0
        %358 = vmatprep.subr.bf16.mxu0 0
        %359 = vmatpush2.bf16.xpose.msra.mxu0 0
        %360 = vmatprep.subr.bf16.mxu0 0
        %361 = vmatpush2.bf16.xpose.msra.mxu0 0
        %362 = vmatprep.subr.bf16.mxu0 0
        %363 = vmatpush2.bf16.xpose.msra.mxu0 0
        %364 = vmatprep.subr.bf16.mxu0 0
        %365 = vmatpush2.bf16.xpose.msra.mxu0 0
        %366 = vmatprep.subr.bf16.mxu0 0
        %367 = vmatpush2.bf16.xpose.msra.mxu0 0
        %368 = vmatprep.subr.bf16.mxu0 0
        %369 = vmatpush2.bf16.xpose.msra.mxu0 0
        %370 = vmatprep.subr.bf16.mxu0 0
        %371 = vmatpush2.bf16.xpose.msra.mxu0 0
        %372 = vmatprep.mubr.bf16.mxu0 0
        %373 = vmatmul.mubr.bf16.gmra.mxu0 %v335
        %v374 = vpop.f32.mrf.mxu0
        %v375 = vadd.f32 0.0, %v374
        %v376 = vpop.f32.mrf.mxu0
        %v377 = vpop.f32.mrf.mxu0
        %v378 = vpop.f32.mrf.mxu0
        %379 = vdwg.mxu0
        %381 = vrot.lane.b32.xlu0 %v327, 96
        %v382 = vpop.permute.xlu0 %381
        %v384 = vsel %vm333, %v327, 0
        %v387 = vsel %vm333, %v382, 0
        %389 = vmatprep.subr.bf16.mxu0 0
        %390 = vmatpush1.bf16.xpose.msra.mxu0 0
        %391 = vmatprep.subr.bf16.mxu0 0
        %392 = vmatpush1.bf16.xpose.msra.mxu0 0
        %393 = vmatprep.subr.bf16.mxu0 0
        %394 = vmatpush1.bf16.xpose.msra.mxu0 0
        %395 = vmatprep.subr.bf16.mxu0 0
        %396 = vmatpush1.bf16.xpose.msra.mxu0 0
        %397 = vmatprep.subr.bf16.mxu0 0
        %398 = vmatpush1.bf16.xpose.msra.mxu0 0
        %399 = vmatprep.subr.bf16.mxu0 0
        %400 = vmatpush1.bf16.xpose.msra.mxu0 0
        %401 = vmatprep.subr.bf16.mxu0 0
        %402 = vmatpush1.bf16.xpose.msra.mxu0 0
        %403 = vmatprep.subr.bf16.mxu0 0
        %404 = vmatpush1.bf16.xpose.msra.mxu0 %v387
        %405 = vmatprep.subr.bf16.mxu0 0
        %406 = vmatpush2.bf16.xpose.msra.mxu0 0
        %407 = vmatprep.subr.bf16.mxu0 0
        %408 = vmatpush2.bf16.xpose.msra.mxu0 0
        %409 = vmatprep.subr.bf16.mxu0 0
        %410 = vmatpush2.bf16.xpose.msra.mxu0 0
        %411 = vmatprep.subr.bf16.mxu0 0
        %412 = vmatpush2.bf16.xpose.msra.mxu0 0
        %413 = vmatprep.subr.bf16.mxu0 0
        %414 = vmatpush2.bf16.xpose.msra.mxu0 0
        %415 = vmatprep.subr.bf16.mxu0 0
        %416 = vmatpush2.bf16.xpose.msra.mxu0 0
        %417 = vmatprep.subr.bf16.mxu0 0
        %418 = vmatpush2.bf16.xpose.msra.mxu0 0
        %419 = vmatprep.subr.bf16.mxu0 0
        %420 = vmatpush2.bf16.xpose.msra.mxu0 0
        %421 = vmatprep.mubr.bf16.mxu0 0
        %422 = vmatmul.mubr.bf16.gmra.mxu0 %v384
        %v423 = vpop.f32.mrf.mxu0
        %v424 = vadd.f32 0.0, %v423
        %v425 = vpop.f32.mrf.mxu0
        %v426 = vpop.f32.mrf.mxu0
        %v427 = vpop.f32.mrf.mxu0
        %428 = vdwg.mxu0
        %430 = vrot.lane.b32.xlu0 %v328, 96
        %v431 = vpop.permute.xlu0 %430
        %v433 = vsel %vm333, %v328, 0
        %v436 = vsel %vm333, %v431, 0
        %438 = vmatprep.subr.bf16.mxu0 0
        %439 = vmatpush1.bf16.xpose.msra.mxu0 0
        %440 = vmatprep.subr.bf16.mxu0 0
        %441 = vmatpush1.bf16.xpose.msra.mxu0 0
        %442 = vmatprep.subr.bf16.mxu0 0
        %443 = vmatpush1.bf16.xpose.msra.mxu0 0
        %444 = vmatprep.subr.bf16.mxu0 0
        %445 = vmatpush1.bf16.xpose.msra.mxu0 0
        %446 = vmatprep.subr.bf16.mxu0 0
        %447 = vmatpush1.bf16.xpose.msra.mxu0 0
        %448 = vmatprep.subr.bf16.mxu0 0
        %449 = vmatpush1.bf16.xpose.msra.mxu0 0
        %450 = vmatprep.subr.bf16.mxu0 0
        %451 = vmatpush1.bf16.xpose.msra.mxu0 0
        %452 = vmatprep.subr.bf16.mxu0 0
        %453 = vmatpush1.bf16.xpose.msra.mxu0 %v436
        %454 = vmatprep.subr.bf16.mxu0 0
        %455 = vmatpush2.bf16.xpose.msra.mxu0 0
        %456 = vmatprep.subr.bf16.mxu0 0
        %457 = vmatpush2.bf16.xpose.msra.mxu0 0
        %458 = vmatprep.subr.bf16.mxu0 0
        %459 = vmatpush2.bf16.xpose.msra.mxu0 0
        %460 = vmatprep.subr.bf16.mxu0 0
        %461 = vmatpush2.bf16.xpose.msra.mxu0 0
        %462 = vmatprep.subr.bf16.mxu0 0
        %463 = vmatpush2.bf16.xpose.msra.mxu0 0
        %464 = vmatprep.subr.bf16.mxu0 0
        %465 = vmatpush2.bf16.xpose.msra.mxu0 0
        %466 = vmatprep.subr.bf16.mxu0 0
        %467 = vmatpush2.bf16.xpose.msra.mxu0 0
        %468 = vmatprep.subr.bf16.mxu0 0
        %469 = vmatpush2.bf16.xpose.msra.mxu0 0
        %470 = vmatprep.mubr.bf16.mxu0 0
        %471 = vmatmul.mubr.bf16.gmra.mxu0 %v433
        %v472 = vpop.f32.mrf.mxu0
        %v473 = vadd.f32 0.0, %v472
        %v474 = vpop.f32.mrf.mxu0
        %v475 = vpop.f32.mrf.mxu0
        %v476 = vpop.f32.mrf.mxu0
        %477 = vdwg.mxu0
        %479 = vrot.lane.b32.xlu0 %v329, 96
        %v480 = vpop.permute.xlu0 %479
        %v482 = vsel %vm333, %v329, 0
        %v485 = vsel %vm333, %v480, 0
        %487 = vmatprep.subr.bf16.mxu0 0
        %488 = vmatpush1.bf16.xpose.msra.mxu0 0
        %489 = vmatprep.subr.bf16.mxu0 0
        %490 = vmatpush1.bf16.xpose.msra.mxu0 0
        %491 = vmatprep.subr.bf16.mxu0 0
        %492 = vmatpush1.bf16.xpose.msra.mxu0 0
        %493 = vmatprep.subr.bf16.mxu0 0
        %494 = vmatpush1.bf16.xpose.msra.mxu0 0
        %495 = vmatprep.subr.bf16.mxu0 0
        %496 = vmatpush1.bf16.xpose.msra.mxu0 0
        %497 = vmatprep.subr.bf16.mxu0 0
        %498 = vmatpush1.bf16.xpose.msra.mxu0 0
        %499 = vmatprep.subr.bf16.mxu0 0
        %500 = vmatpush1.bf16.xpose.msra.mxu0 0
        %501 = vmatprep.subr.bf16.mxu0 0
        %502 = vmatpush1.bf16.xpose.msra.mxu0 %v485
        %503 = vmatprep.subr.bf16.mxu0 0
        %504 = vmatpush2.bf16.xpose.msra.mxu0 0
        %505 = vmatprep.subr.bf16.mxu0 0
        %506 = vmatpush2.bf16.xpose.msra.mxu0 0
        %507 = vmatprep.subr.bf16.mxu0 0
        %508 = vmatpush2.bf16.xpose.msra.mxu0 0
        %509 = vmatprep.subr.bf16.mxu0 0
        %510 = vmatpush2.bf16.xpose.msra.mxu0 0
        %511 = vmatprep.subr.bf16.mxu0 0
        %512 = vmatpush2.bf16.xpose.msra.mxu0 0
        %513 = vmatprep.subr.bf16.mxu0 0
        %514 = vmatpush2.bf16.xpose.msra.mxu0 0
        %515 = vmatprep.subr.bf16.mxu0 0
        %516 = vmatpush2.bf16.xpose.msra.mxu0 0
        %517 = vmatprep.subr.bf16.mxu0 0
        %518 = vmatpush2.bf16.xpose.msra.mxu0 0
        %519 = vmatprep.mubr.bf16.mxu0 0
        %520 = vmatmul.mubr.bf16.gmra.mxu0 %v482
        %v521 = vpop.f32.mrf.mxu0
        %v522 = vadd.f32 0.0, %v521
        %v523 = vpop.f32.mrf.mxu0
        %v524 = vpop.f32.mrf.mxu0
        %v525 = vpop.f32.mrf.mxu0
        %526 = vdwg.mxu0
        %v528 = vlaneseq
        %v529 = vshrl.u32 %v528, 7
        %v530 = vsub.s32 0, %v529
        %v531 = vrot.slane %v249, %v530
        %v533 = vmul.f32 %v375, %v531
        %v534 = vmul.f32 %v424, %v531
        %v535 = vmul.f32 %v473, %v531
        %v536 = vmul.f32 %v522, %v531
        %v537 = vsel %vm333, %v533, -inf
        %538 = vmax.xlane.f32.xlu0 %v537
        %v539 = vpop.xlane.xlu0 %538
        %v540 = vsel %vm333, %v534, -inf
        %541 = vmax.xlane.f32.xlu0 %v540
        %v542 = vpop.xlane.xlu0 %541
        %v543 = vsel %vm333, %v535, -inf
        %544 = vmax.xlane.f32.xlu0 %v543
        %v545 = vpop.xlane.xlu0 %544
        %v546 = vsel %vm333, %v536, -inf
        %547 = vmax.xlane.f32.xlu0 %v546
        %v548 = vpop.xlane.xlu0 %547
        %v549 = vsub.f32 %v533, %v539
        %v550 = vsub.f32 %v534, %v542
        %v551 = vsub.f32 %v535, %v545
        %v552 = vsub.f32 %v536, %v548
        %v553 = vmul.f32 %v549, 1.442695
        %v554 = vpow.pop %v553
        %v555 = vmul.f32 %v550, 1.442695
        %v556 = vpow.pop %v555
        %v557 = vmul.f32 %v551, 1.442695
        %v558 = vpow.pop %v557
        %v559 = vmul.f32 %v552, 1.442695
        %v560 = vpow.pop %v559
        %v561 = vsel %vm333, %v554, 0.0
        %562 = vadd.xlane.f32.xlu0 %v561
        %v563 = vpop.xlane.xlu0 %562
        %v564 = vsel %vm333, %v556, 0.0
        %565 = vadd.xlane.f32.xlu0 %v564
        %v566 = vpop.xlane.xlu0 %565
        %v567 = vsel %vm333, %v558, 0.0
        %568 = vadd.xlane.f32.xlu0 %v567
        %v569 = vpop.xlane.xlu0 %568
        %v570 = vsel %vm333, %v560, 0.0
        %571 = vadd.xlane.f32.xlu0 %v570
        %v572 = vpop.xlane.xlu0 %571
        %v573 = vrcp.pop %v563
        %v574 = vrcp.pop %v566
        %v575 = vrcp.pop %v569
        %v576 = vrcp.pop %v572
        %v577 = vmul.f32 %v554, %v573
        %v578 = vmul.f32 %v556, %v574
        %v579 = vmul.f32 %v558, %v575
        %v580 = vmul.f32 %v560, %v576
        %v581 = vpack.c.bf16 %v577, %v577
        %v582 = vpack.c.bf16 %v578, %v578
        %v583 = vpack.c.bf16 %v579, %v579
        %v584 = vpack.c.bf16 %v580, %v580
        %585 = vrot.lane.b32.xlu0 %v326, 64
        %v586 = vpop.permute.xlu0 %585
        %v588 = vsel %vm333, %v581, 0
        %vm590 = vcmask 1043456
        %v592 = vsel %vm590, %v586, 0
        %594 = vmatprep.subr.bf16.mxu0 0
        %595 = vmatpush1.bf16.msra.mxu0 0
        %596 = vmatprep.subr.bf16.mxu0 0
        %597 = vmatpush1.bf16.msra.mxu0 0
        %598 = vmatprep.subr.bf16.mxu0 0
        %599 = vmatpush1.bf16.msra.mxu0 0
        %600 = vmatprep.subr.bf16.mxu0 0
        %601 = vmatpush1.bf16.msra.mxu0 0
        %602 = vmatprep.subr.bf16.mxu0 0
        %603 = vmatpush1.bf16.msra.mxu0 0
        %604 = vmatprep.subr.bf16.mxu0 0
        %605 = vmatpush1.bf16.msra.mxu0 0
        %606 = vmatprep.subr.bf16.mxu0 0
        %607 = vmatpush1.bf16.msra.mxu0 0
        %608 = vmatprep.subr.bf16.mxu0 0
        %609 = vmatpush1.bf16.msra.mxu0 %v592
        %610 = vmatprep.subr.bf16.mxu0 0
        %611 = vmatpush2.bf16.msra.mxu0 0
        %612 = vmatprep.subr.bf16.mxu0 0
        %613 = vmatpush2.bf16.msra.mxu0 0
        %614 = vmatprep.subr.bf16.mxu0 0
        %615 = vmatpush2.bf16.msra.mxu0 0
        %616 = vmatprep.subr.bf16.mxu0 0
        %617 = vmatpush2.bf16.msra.mxu0 0
        %618 = vmatprep.subr.bf16.mxu0 0
        %619 = vmatpush2.bf16.msra.mxu0 0
        %620 = vmatprep.subr.bf16.mxu0 0
        %621 = vmatpush2.bf16.msra.mxu0 0
        %622 = vmatprep.subr.bf16.mxu0 0
        %623 = vmatpush2.bf16.msra.mxu0 0
        %624 = vmatprep.subr.bf16.mxu0 0
        %625 = vmatpush2.bf16.msra.mxu0 0
        %626 = vmatprep.mubr.bf16.mxu0 0
        %627 = vmatmul.mubr.bf16.gmra.mxu0 %v588
        %v628 = vpop.f32.mrf.mxu0
        %v629 = vadd.f32 0.0, %v628
        %v630 = vpop.f32.mrf.mxu0
        %v631 = vpop.f32.mrf.mxu0
        %v632 = vpop.f32.mrf.mxu0
        %633 = vdwg.mxu0
        %634 = vrot.lane.b32.xlu0 %v327, 64
        %v635 = vpop.permute.xlu0 %634
        %v637 = vsel %vm333, %v582, 0
        %v640 = vsel %vm590, %v635, 0
        %642 = vmatprep.subr.bf16.mxu0 0
        %643 = vmatpush1.bf16.msra.mxu0 0
        %644 = vmatprep.subr.bf16.mxu0 0
        %645 = vmatpush1.bf16.msra.mxu0 0
        %646 = vmatprep.subr.bf16.mxu0 0
        %647 = vmatpush1.bf16.msra.mxu0 0
        %648 = vmatprep.subr.bf16.mxu0 0
        %649 = vmatpush1.bf16.msra.mxu0 0
        %650 = vmatprep.subr.bf16.mxu0 0
        %651 = vmatpush1.bf16.msra.mxu0 0
        %652 = vmatprep.subr.bf16.mxu0 0
        %653 = vmatpush1.bf16.msra.mxu0 0
        %654 = vmatprep.subr.bf16.mxu0 0
        %655 = vmatpush1.bf16.msra.mxu0 0
        %656 = vmatprep.subr.bf16.mxu0 0
        %657 = vmatpush1.bf16.msra.mxu0 %v640
        %658 = vmatprep.subr.bf16.mxu0 0
        %659 = vmatpush2.bf16.msra.mxu0 0
        %660 = vmatprep.subr.bf16.mxu0 0
        %661 = vmatpush2.bf16.msra.mxu0 0
        %662 = vmatprep.subr.bf16.mxu0 0
        %663 = vmatpush2.bf16.msra.mxu0 0
        %664 = vmatprep.subr.bf16.mxu0 0
        %665 = vmatpush2.bf16.msra.mxu0 0
        %666 = vmatprep.subr.bf16.mxu0 0
        %667 = vmatpush2.bf16.msra.mxu0 0
        %668 = vmatprep.subr.bf16.mxu0 0
        %669 = vmatpush2.bf16.msra.mxu0 0
        %670 = vmatprep.subr.bf16.mxu0 0
        %671 = vmatpush2.bf16.msra.mxu0 0
        %672 = vmatprep.subr.bf16.mxu0 0
        %673 = vmatpush2.bf16.msra.mxu0 0
        %674 = vmatprep.mubr.bf16.mxu0 0
        %675 = vmatmul.mubr.bf16.gmra.mxu0 %v637
        %v676 = vpop.f32.mrf.mxu0
        %v677 = vadd.f32 0.0, %v676
        %v678 = vpop.f32.mrf.mxu0
        %v679 = vpop.f32.mrf.mxu0
        %v680 = vpop.f32.mrf.mxu0
        %681 = vdwg.mxu0
        %682 = vrot.lane.b32.xlu0 %v328, 64
        %v683 = vpop.permute.xlu0 %682
        %v685 = vsel %vm333, %v583, 0
        %v688 = vsel %vm590, %v683, 0
        %690 = vmatprep.subr.bf16.mxu0 0
        %691 = vmatpush1.bf16.msra.mxu0 0
        %692 = vmatprep.subr.bf16.mxu0 0
        %693 = vmatpush1.bf16.msra.mxu0 0
        %694 = vmatprep.subr.bf16.mxu0 0
        %695 = vmatpush1.bf16.msra.mxu0 0
        %696 = vmatprep.subr.bf16.mxu0 0
        %697 = vmatpush1.bf16.msra.mxu0 0
        %698 = vmatprep.subr.bf16.mxu0 0
        %699 = vmatpush1.bf16.msra.mxu0 0
        %700 = vmatprep.subr.bf16.mxu0 0
        %701 = vmatpush1.bf16.msra.mxu0 0
        %702 = vmatprep.subr.bf16.mxu0 0
        %703 = vmatpush1.bf16.msra.mxu0 0
        %704 = vmatprep.subr.bf16.mxu0 0
        %705 = vmatpush1.bf16.msra.mxu0 %v688
        %706 = vmatprep.subr.bf16.mxu0 0
        %707 = vmatpush2.bf16.msra.mxu0 0
        %708 = vmatprep.subr.bf16.mxu0 0
        %709 = vmatpush2.bf16.msra.mxu0 0
        %710 = vmatprep.subr.bf16.mxu0 0
        %711 = vmatpush2.bf16.msra.mxu0 0
        %712 = vmatprep.subr.bf16.mxu0 0
        %713 = vmatpush2.bf16.msra.mxu0 0
        %714 = vmatprep.subr.bf16.mxu0 0
        %715 = vmatpush2.bf16.msra.mxu0 0
        %716 = vmatprep.subr.bf16.mxu0 0
        %717 = vmatpush2.bf16.msra.mxu0 0
        %718 = vmatprep.subr.bf16.mxu0 0
        %719 = vmatpush2.bf16.msra.mxu0 0
        %720 = vmatprep.subr.bf16.mxu0 0
        %721 = vmatpush2.bf16.msra.mxu0 0
        %722 = vmatprep.mubr.bf16.mxu0 0
        %723 = vmatmul.mubr.bf16.gmra.mxu0 %v685
        %v724 = vpop.f32.mrf.mxu0
        %v725 = vadd.f32 0.0, %v724
        %v726 = vpop.f32.mrf.mxu0
        %v727 = vpop.f32.mrf.mxu0
        %v728 = vpop.f32.mrf.mxu0
        %729 = vdwg.mxu0
        %730 = vrot.lane.b32.xlu0 %v329, 64
        %v731 = vpop.permute.xlu0 %730
        %v733 = vsel %vm333, %v584, 0
        %v736 = vsel %vm590, %v731, 0
        %738 = vmatprep.subr.bf16.mxu0 0
        %739 = vmatpush1.bf16.msra.mxu0 0
        %740 = vmatprep.subr.bf16.mxu0 0
        %741 = vmatpush1.bf16.msra.mxu0 0
        %742 = vmatprep.subr.bf16.mxu0 0
        %743 = vmatpush1.bf16.msra.mxu0 0
        %744 = vmatprep.subr.bf16.mxu0 0
        %745 = vmatpush1.bf16.msra.mxu0 0
        %746 = vmatprep.subr.bf16.mxu0 0
        %747 = vmatpush1.bf16.msra.mxu0 0
        %748 = vmatprep.subr.bf16.mxu0 0
        %749 = vmatpush1.bf16.msra.mxu0 0
        %750 = vmatprep.subr.bf16.mxu0 0
        %751 = vmatpush1.bf16.msra.mxu0 0
        %752 = vmatprep.subr.bf16.mxu0 0
        %753 = vmatpush1.bf16.msra.mxu0 %v736
        %754 = vmatprep.subr.bf16.mxu0 0
        %755 = vmatpush2.bf16.msra.mxu0 0
        %756 = vmatprep.subr.bf16.mxu0 0
        %757 = vmatpush2.bf16.msra.mxu0 0
        %758 = vmatprep.subr.bf16.mxu0 0
        %759 = vmatpush2.bf16.msra.mxu0 0
        %760 = vmatprep.subr.bf16.mxu0 0
        %761 = vmatpush2.bf16.msra.mxu0 0
        %762 = vmatprep.subr.bf16.mxu0 0
        %763 = vmatpush2.bf16.msra.mxu0 0
        %764 = vmatprep.subr.bf16.mxu0 0
        %765 = vmatpush2.bf16.msra.mxu0 0
        %766 = vmatprep.subr.bf16.mxu0 0
        %767 = vmatpush2.bf16.msra.mxu0 0
        %768 = vmatprep.subr.bf16.mxu0 0
        %769 = vmatpush2.bf16.msra.mxu0 0
        %770 = vmatprep.mubr.bf16.mxu0 0
        %771 = vmatmul.mubr.bf16.gmra.mxu0 %v733
        %v772 = vpop.f32.mrf.mxu0
        %v773 = vadd.f32 0.0, %v772
        %v774 = vpop.f32.mrf.mxu0
        %v775 = vpop.f32.mrf.mxu0
        %v776 = vpop.f32.mrf.mxu0
        %777 = vdwg.mxu0
        %779 = vrot.lane.b32.xlu0 %v677, 8
        %v780 = vpop.permute.xlu0 %779
        %783 = vrot.lane.b32.xlu0 %v725, 16
        %v784 = vpop.permute.xlu0 %783
        %787 = vrot.lane.b32.xlu0 %v773, 24
        %v788 = vpop.permute.xlu0 %787
        %v790 = vsel %vm333, %v629, %v780
        %vm791 = vcmask 130048
        %v792 = vsel %vm791, %v790, %v784
        %vm793 = vcmask 195584
        %v794 = vsel %vm793, %v792, %v788
        %v795 = vpack.c.bf16 %v794, %v794
        %v796 = vlaneseq
        %v797 = vshrl.u32 %v796, 7
        %v798 = vsub.s32 2, %v797
        %v799 = vrot.slane %v254, %v798
        %800 = vrot.lane.b32.xlu0 %v268, 32
        %v801 = vpop.permute.xlu0 %800
        %802 = vrot.lane.b32.xlu0 %v269, 32
        %v803 = vpop.permute.xlu0 %802
        %v807 = vsel %vm272, %v795, 0
        %809 = vmatprep.subr.bf16.mxu0 0
        %810 = vmatpush1.bf16.msra.mxu0 0
        %811 = vmatprep.subr.bf16.mxu0 0
        %812 = vmatpush1.bf16.msra.mxu0 0
        %813 = vmatprep.subr.bf16.mxu0 0
        %814 = vmatpush1.bf16.msra.mxu0 0
        %815 = vmatprep.subr.bf16.mxu0 0
        %816 = vmatpush1.bf16.msra.mxu0 0
        %817 = vmatprep.subr.bf16.mxu0 0
        %818 = vmatpush1.bf16.msra.mxu0 0
        %819 = vmatprep.subr.bf16.mxu0 0
        %820 = vmatpush1.bf16.msra.mxu0 0
        %821 = vmatprep.subr.bf16.mxu0 0
        %822 = vmatpush1.bf16.msra.mxu0 %v803
        %823 = vmatprep.subr.bf16.mxu0 0
        %824 = vmatpush1.bf16.msra.mxu0 %v801
        %825 = vmatprep.subr.bf16.mxu0 0
        %826 = vmatpush2.bf16.msra.mxu0 0
        %827 = vmatprep.subr.bf16.mxu0 0
        %828 = vmatpush2.bf16.msra.mxu0 0
        %829 = vmatprep.subr.bf16.mxu0 0
        %830 = vmatpush2.bf16.msra.mxu0 0
        %831 = vmatprep.subr.bf16.mxu0 0
        %832 = vmatpush2.bf16.msra.mxu0 0
        %833 = vmatprep.subr.bf16.mxu0 0
        %834 = vmatpush2.bf16.msra.mxu0 0
        %835 = vmatprep.subr.bf16.mxu0 0
        %836 = vmatpush2.bf16.msra.mxu0 0
        %837 = vmatprep.subr.bf16.mxu0 0
        %838 = vmatpush2.bf16.msra.mxu0 0
        %839 = vmatprep.subr.bf16.mxu0 0
        %840 = vmatpush2.bf16.msra.mxu0 0
        %841 = vmatprep.mubr.bf16.mxu0 0
        %842 = vmatmul.mubr.bf16.gmra.mxu0 %v807
        %v843 = vpop.f32.mrf.mxu0
        %v844 = vadd.f32 %v799, %v843
        %v845 = vpop.f32.mrf.mxu0
        %v846 = vpop.f32.mrf.mxu0
        %v847 = vpop.f32.mrf.mxu0
        %848 = vdwg.mxu0
        %v849 = vadd.f32 %v844, %v248
        %v850 = vsel %vm272, %v849, 0.0
        %851 = vadd.xlane.f32.xlu0 %v850
        %v852 = vpop.xlane.xlu0 %851
        %v853 = vrcp.pop 32.0
        %v854 = vmul.f32 %v852, %v853
        %v855 = vsub.f32 %v849, %v854
        %v856 = vmul.f32 %v855, %v855
        %v857 = vsel %vm272, %v856, 0.0
        %858 = vadd.xlane.f32.xlu0 %v857
        %v859 = vpop.xlane.xlu0 %858
        %v860 = vmul.f32 %v859, %v853
        %v861 = vadd.f32 %v860, 1e-12
        %v862 = vrsqrt.pop %v861
        %v863 = vmul.f32 %v855, %v862
        %v864 = vlaneseq
        %v865 = vshrl.u32 %v864, 7
        %v866 = vsub.s32 4, %v865
        %v867 = vrot.slane %v254, %v866
        %v868 = vmul.f32 %v863, %v867
        %v869 = vlaneseq
        %v870 = vshrl.u32 %v869, 7
        %v871 = vsub.s32 5, %v870
        %v872 = vrot.slane %v254, %v871
        %v873 = vadd.f32 %v868, %v872
        %v874 = vpack.c.bf16 %v873, %v873
        %v875 = vlaneseq
        %v876 = vshrl.u32 %v875, 7
        %v877 = vsub.s32 1, %v876
        %v878 = vrot.slane %v254, %v877
        %v879 = vunpack.c.h.b16 %v250
        %v880 = vunpack.c.h.b16 %v251
        %v881 = vunpack.c.h.b16 %v252
        %v882 = vunpack.c.h.b16 %v253
        %v883 = vpack.c.b16 %v880, %v879
        %v884 = vpack.c.b16 %v882, %v881
        %v888 = vsel %vm272, %v874, 0
        %890 = vmatprep.subr.bf16.mxu0 0
        %891 = vmatpush1.bf16.msra.mxu0 0
        %892 = vmatprep.subr.bf16.mxu0 0
        %893 = vmatpush1.bf16.msra.mxu0 0
        %894 = vmatprep.subr.bf16.mxu0 0
        %895 = vmatpush1.bf16.msra.mxu0 0
        %896 = vmatprep.subr.bf16.mxu0 0
        %897 = vmatpush1.bf16.msra.mxu0 0
        %898 = vmatprep.subr.bf16.mxu0 0
        %899 = vmatpush1.bf16.msra.mxu0 0
        %900 = vmatprep.subr.bf16.mxu0 0
        %901 = vmatpush1.bf16.msra.mxu0 0
        %902 = vmatprep.subr.bf16.mxu0 0
        %903 = vmatpush1.bf16.msra.mxu0 %v884
        %904 = vmatprep.subr.bf16.mxu0 0
        %905 = vmatpush1.bf16.msra.mxu0 %v883
        %906 = vmatprep.subr.bf16.mxu0 0
        %907 = vmatpush2.bf16.msra.mxu0 0
        %908 = vmatprep.subr.bf16.mxu0 0
        %909 = vmatpush2.bf16.msra.mxu0 0
        %910 = vmatprep.subr.bf16.mxu0 0
        %911 = vmatpush2.bf16.msra.mxu0 0
        %912 = vmatprep.subr.bf16.mxu0 0
        %913 = vmatpush2.bf16.msra.mxu0 0
        %914 = vmatprep.subr.bf16.mxu0 0
        %915 = vmatpush2.bf16.msra.mxu0 0
        %916 = vmatprep.subr.bf16.mxu0 0
        %917 = vmatpush2.bf16.msra.mxu0 0
        %918 = vmatprep.subr.bf16.mxu0 0
        %919 = vmatpush2.bf16.msra.mxu0 0
        %920 = vmatprep.subr.bf16.mxu0 0
        %921 = vmatpush2.bf16.msra.mxu0 0
        %922 = vmatprep.mubr.bf16.mxu0 0
        %923 = vmatmul.mubr.bf16.gmra.mxu0 %v888
        %v924 = vpop.f32.mrf.mxu0
        %v925 = vadd.f32 %v878, %v924
        %v926 = vpop.f32.mrf.mxu0
        %v927 = vpop.f32.mrf.mxu0
        %v928 = vpop.f32.mrf.mxu0
        %929 = vdwg.mxu0
        %v930 = vmul.f32 %v925, 0.5
        %v931 = vmul.f32 %v925, 0.70710677
        %v932 = verf.f32.pop %v931
        %v933 = vadd.f32 %v932, 1.0
        %v934 = vmul.f32 %v930, %v933
        %v935 = vpack.c.bf16 %v934, %v934
        %v936 = vld [vmem:[%s3] sm:$0xf]
        %v937 = vld [vmem:[%s3 + $0x4] sm:$0xf]
        %v938 = vld [vmem:[%s3 + $0x8] sm:$0xf]
        %v939 = vld [vmem:[%s3 + $0xc] sm:$0xf]
        %v940 = vld [vmem:[%s3 + $0x10] sm:$0xf]
        %v941 = vld [vmem:[%s3 + $0x14] sm:$0xf]
        %v942 = vld [vmem:[%s3 + $0x18] sm:$0xf]
        %v943 = vld [vmem:[%s3 + $0x1c] sm:$0xf]
        %v944 = vlaneseq
        %v945 = vshrl.u32 %v944, 7
        %v946 = vsub.s32 3, %v945
        %v947 = vrot.slane %v254, %v946
        %v956 = vunpack.c.l.b16 %v936
        %v957 = vunpack.c.l.b16 %v937
        %v958 = vunpack.c.l.b16 %v938
        %v959 = vunpack.c.l.b16 %v939
        %v960 = vunpack.c.l.b16 %v940
        %v961 = vunpack.c.l.b16 %v941
        %v962 = vunpack.c.l.b16 %v942
        %v963 = vunpack.c.l.b16 %v943
        %v964 = vpack.c.b16 %v957, %v956
        %v965 = vpack.c.b16 %v959, %v958
        %v966 = vpack.c.b16 %v961, %v960
        %v967 = vpack.c.b16 %v963, %v962
        %vm972 = vcmask 523264
        %v974 = vsel %vm972, %v935, 0
        %976 = vmatprep.subr.bf16.mxu0 0
        %977 = vmatpush1.bf16.msra.mxu0 0
        %978 = vmatprep.subr.bf16.mxu0 0
        %979 = vmatpush1.bf16.msra.mxu0 0
        %980 = vmatprep.subr.bf16.mxu0 0
        %981 = vmatpush1.bf16.msra.mxu0 0
        %982 = vmatprep.subr.bf16.mxu0 0
        %983 = vmatpush1.bf16.msra.mxu0 0
        %984 = vmatprep.subr.bf16.mxu0 0
        %985 = vmatpush1.bf16.msra.mxu0 %v967
        %986 = vmatprep.subr.bf16.mxu0 0
        %987 = vmatpush1.bf16.msra.mxu0 %v966
        %988 = vmatprep.subr.bf16.mxu0 0
        %989 = vmatpush1.bf16.msra.mxu0 %v965
        %990 = vmatprep.subr.bf16.mxu0 0
        %991 = vmatpush1.bf16.msra.mxu0 %v964
        %992 = vmatprep.subr.bf16.mxu0 0
        %993 = vmatpush2.bf16.msra.mxu0 0
        %994 = vmatprep.subr.bf16.mxu0 0
        %995 = vmatpush2.bf16.msra.mxu0 0
        %996 = vmatprep.subr.bf16.mxu0 0
        %997 = vmatpush2.bf16.msra.mxu0 0
        %998 = vmatprep.subr.bf16.mxu0 0
        %999 = vmatpush2.bf16.msra.mxu0 0
        %1000 = vmatprep.subr.bf16.mxu0 0
        %1001 = vmatpush2.bf16.msra.mxu0 0
        %1002 = vmatprep.subr.bf16.mxu0 0
        %1003 = vmatpush2.bf16.msra.mxu0 0
        %1004 = vmatprep.subr.bf16.mxu0 0
        %1005 = vmatpush2.bf16.msra.mxu0 0
        %1006 = vmatprep.subr.bf16.mxu0 0
        %1007 = vmatpush2.bf16.msra.mxu0 0
        %1008 = vmatprep.mubr.bf16.mxu0 0
        %1009 = vmatmul.mubr.bf16.gmra.mxu0 %v974
        %v1010 = vpop.f32.mrf.mxu0
        %v1011 = vadd.f32 %v947, %v1010
        %v1012 = vpop.f32.mrf.mxu0
        %v1013 = vpop.f32.mrf.mxu0
        %v1014 = vpop.f32.mrf.mxu0
        %1015 = vdwg.mxu0
        %v1016 = vadd.f32 %v1011, %v873
        %v1017 = vsel %vm272, %v1016, 0.0
        %1018 = vadd.xlane.f32.xlu0 %v1017
        %v1019 = vpop.xlane.xlu0 %1018
        %v1020 = vmul.f32 %v1019, %v853
        %v1021 = vsub.f32 %v1016, %v1020
        %v1022 = vmul.f32 %v1021, %v1021
        %v1023 = vsel %vm272, %v1022, 0.0
        %1024 = vadd.xlane.f32.xlu0 %v1023
        %v1025 = vpop.xlane.xlu0 %1024
        %v1026 = vmul.f32 %v1025, %v853
        %v1027 = vadd.f32 %v1026, 1e-12
        %v1028 = vrsqrt.pop %v1027
        %v1029 = vmul.f32 %v1021, %v1028
        %v1030 = vlaneseq
        %v1031 = vshrl.u32 %v1030, 7
        %v1032 = vsub.s32 6, %v1031
        %v1033 = vrot.slane %v254, %v1032
        %v1034 = vmul.f32 %v1029, %v1033
        %v1035 = vlaneseq
        %v1036 = vshrl.u32 %v1035, 7
        %v1037 = vsub.s32 7, %v1036
        %v1038 = vrot.slane %v254, %v1037
        %v1039 = vadd.f32 %v1034, %v1038
        %1040 = vst.msk [vmem:[%s239] sm:$0xff] %vm272, %v1039
        %s1041 = sand.u32 %s143, 1
        %s1042 = scalar_lea.sflag [#allocation4], %s1041
        %s1043 = sand.u32 %s143, 1
        %s1044 = smul.addr %s1043, 8
        %s1045 = scalar_lea.vmem [#allocation5], %s1044
        // Predicated region
        $region45: #{tpu_custom_call.1} parent=39 // pred_check
          %p1046 = pneg %p153
        $region46: #{tpu_custom_call.1} parent=39 // pred_check_branch
          %1048 = sbr.rel (%p1046) target = $region48
        $region47: #{tpu_custom_call.1} parent=39 // pred_region
          %s1050 = ssub.s32 128, 128
          %1051 = vsyncadd %s1042, %s1050
          %s1052 = smul.addr %s20, 128
          %s1053 = scalar_lea.hbm %s5, %s1052
          %s1055 = sshll.u32 %s1045, 4
          %s1056 = int_to_ptr.vmem [resolvable:$true] %s1055
          %1058 = dma.vmem_to_hbm [thread:$0]  %s1056, 128, %s1053, %s1042
        $region48: #{tpu_custom_call.1} parent=39 // pred_fallthru
          _
      $region40: #{tpu_custom_call.1} parent=5 // pred_fallthru
        _
      %p1059 = scmp.le.s32.totalorder 2, %s15
      // Predicated region
      $region49: #{tpu_custom_call.1} parent=5 // pred_check
        %p1060 = pneg %p1059
      $region50: #{tpu_custom_call.1} parent=5 // pred_check_branch
        %1062 = sbr.rel (%p1060) target = $region52
      $region51: #{tpu_custom_call.1} parent=5 // pred_region
        %s1063 = ssub.s32 %s15, 2
        // Predicated region
        $region53: #{tpu_custom_call.1} parent=51 // pred_check
          %p1064 = pneg %p159
        $region54: #{tpu_custom_call.1} parent=51 // pred_check_branch
          %1066 = sbr.rel (%p1064) target = $region56
        $region55: #{tpu_custom_call.1} parent=51 // pred_region
          %s1067 = sand.u32 %s144, 1
          %s1068 = scalar_lea.sflag [#allocation4], %s1067
          %s1069 = sand.u32 %s144, 1
          %s1070 = smul.addr %s1069, 8
          %s1071 = scalar_lea.vmem [#allocation5], %s1070
          %1072 = dma.done %s1068, 128
        $region56: #{tpu_custom_call.1} parent=51 // pred_fallthru
          _
      $region52: #{tpu_custom_call.1} parent=5 // pred_fallthru
        _
    $region6: #{tpu_custom_call.1} parent=1 // loop_footer
      %s19 = sadd.s32 1, %s15
    $region7: #{tpu_custom_call.1} parent=1 // loop_footer_branch
      %14 = sbr.rel target = $region3
    $region8: #{tpu_custom_call.1} parent=1 // loop_exit
      _
    %1073 = vsyncpa [#allocation3], 1
    %s1074 = scalar_lea.sflag [#allocation3], 1
    %1075 = vsyncpa %s1074, 1
    %1076 = vsyncpa [#allocation4], 1
    %s1077 = scalar_lea.sflag [#allocation4], 1
    %1078 = vsyncpa %s1077, 1

</llo_original>
